<compile_context>
chip_gen: v6e
topology: v6e:2x2x1
jax: 0.10.0
libtpu: 0.0.40
codegen_flags: <defaults>
</compile_context>

<pallas_src>
import functools

import jax
import jax.numpy as jnp
from jax.experimental import pallas as pl
from jax.experimental.pallas import tpu as pltpu


# ----------------------------------------------------------------------------
# Kernel: the entire MLP hot path on one lane-dense batch tile.
# Activations are carried as (features, batch_tile) -- batch on the 128-lane
# axis -- so the tanh (EUP) work runs on fully packed vregs and the final
# store is an unmasked lane-dense vst.
# ----------------------------------------------------------------------------
def _mlp_kernel(n_layers, last_reduce, matmul_dtype, *refs):
    x_ref = refs[0]
    w_refs = refs[1 : 1 + n_layers]
    b_refs = refs[1 + n_layers : 1 + 2 * n_layers]
    out_ref = refs[1 + 2 * n_layers]
    f32 = jnp.float32

    # ---- Layer 0: x arrives untransposed as (batch_tile, d_in).  Contract
    # over d_in (last dim of both operands) to get the lane-dense
    # (hidden0, batch_tile) activation without any wrapper/HBM transpose.
    h = jax.lax.dot_general(
        w_refs[0][...].astype(matmul_dtype),
        x_ref[...].astype(matmul_dtype),
        dimension_numbers=(((1,), (1,)), ((), ())),
        preferred_element_type=f32,
    ) + b_refs[0][...].astype(f32)
    if n_layers > 1:
        h = jnp.tanh(h)

    # ---- Remaining layers: h = W @ h + b ; tanh on all but the last.
    for li in range(1, n_layers):
        is_last = li == n_layers - 1
        b = b_refs[li][...].astype(f32)
        if is_last and last_reduce:
            # out_features == 1: keep it off the MXU (a 1-row matmul wastes a
            # whole systolic pass).  Weight was passed pre-transposed as a
            # (hidden, 1) column: VPU broadcast-multiply over the batch lanes
            # + XLU sublane-axis reduction.
            h = jnp.sum(w_refs[li][...].astype(f32) * h,
                        axis=0, keepdims=True) + b
        else:
            h = jnp.dot(
                w_refs[li][...].astype(matmul_dtype),
                h.astype(matmul_dtype),
                preferred_element_type=f32,
            ) + b
            if not is_last:
                h = jnp.tanh(h)

    out_ref[...] = h.astype(out_ref.dtype)


_MAX_TILE = 4096  # lanes; per-tile VMEM stays ~1 MiB even at 4096


def _plan_tiling(B):
    """Return (padded_batch, batch_tile)."""
    if B < 256:
        # Single whole-batch tile: block dims == array dims, so no (8,128)
        # alignment requirement and no padding; grid overhead is one step.
        return B, B
    # Lane-dense, 128-aligned tiles sized so the "parallel" grid axis has at
    # least 2 steps (v7x has 2 TensorCores per chip) while each step still
    # does enough work to bury the ~0.35us per-grid-step overhead.
    half = max(128, ((B // 2 + 64) // 128) * 128)
    tile = min(_MAX_TILE, half)
    padded = ((B + tile - 1) // tile) * tile
    return padded, tile


# ----------------------------------------------------------------------------
# Wrapper
# ----------------------------------------------------------------------------
def pinn_forward(x, weights, biases, *, batch_tile=None,
                 matmul_dtype=jnp.float32):
    n_layers = len(weights)
    B, d_in = x.shape
    d_out = weights[-1].shape[0]

    if batch_tile is None:
        B_pad, tile = _plan_tiling(B)
    else:
        tile = batch_tile
        B_pad = ((B + tile - 1) // tile) * tile
    if tile != B_pad:
        assert tile % 128 == 0, "tiled runs need a 128-aligned batch tile"

    # Zero-pad the batch only when B does not divide the tile; padded rows
    # produce garbage outputs that are sliced off below.
    x_in = x if B_pad == B else jnp.pad(x, ((0, B_pad - B), (0, 0)))

    # Final layer with a single output: pass its weight pre-transposed as a
    # (hidden, 1) column so the kernel can use the VPU/XLU reduction path.
    last_reduce = (d_out == 1) and (n_layers > 1)
    kernel_weights = list(weights)
    if last_reduce:
        kernel_weights[-1] = weights[-1].T  # (1, hidden) -> (hidden, 1), tiny

    in_specs = [pl.BlockSpec((tile, d_in), lambda i: (i, 0))]
    for w in kernel_weights:
        # Constant index map -> block stays resident, no re-DMA across steps.
        in_specs.append(pl.BlockSpec(w.shape, lambda i: (0, 0)))
    for b in biases:
        in_specs.append(pl.BlockSpec(b.shape, lambda i: (0, 0)))
    # Lane-dense output: (d_out, batch) keeps the store an unmasked vst.
    out_spec = pl.BlockSpec((d_out, tile), lambda i: (0, i))

    flops = 2 * B_pad * sum(int(w.shape[0]) * int(w.shape[1]) for w in weights)
    transcendentals = B_pad * sum(int(w.shape[0]) for w in weights[:-1])
    bytes_accessed = (
        B_pad * d_in * x.dtype.itemsize
        + B_pad * d_out * x.dtype.itemsize
        + sum(int(w.size) * w.dtype.itemsize for w in weights)
        + sum(int(b.size) * b.dtype.itemsize for b in biases)
    )

    kernel = functools.partial(_mlp_kernel, n_layers, last_reduce, matmul_dtype)
    out_t = pl.pallas_call(
        kernel,
        grid=(B_pad // tile,),
        in_specs=in_specs,
        out_specs=out_spec,
        out_shape=jax.ShapeDtypeStruct((d_out, B_pad), x.dtype),
        compiler_params=pltpu.CompilerParams(
            dimension_semantics=("parallel",)),
        cost_estimate=pl.CostEstimate(
            flops=flops,
            transcendentals=transcendentals,
            bytes_accessed=bytes_accessed,
        ),
    )(x_in, *kernel_weights, *biases)

    out_t = out_t[:, :B] if B_pad != B else out_t
    if d_out == 1:
        # (1, B) and (B, 1) are the same contiguous bytes: reshape, not .T.
        return out_t.reshape(B, d_out)
    return out_t.T  # d_out > 1: genuine (small) transpose


# ----------------------------------------------------------------------------
# Deterministic parameter init matching the PyTorch module:
#   xavier_normal_(weight, gain=1.0), zeros_(bias)
# Weights kept in PyTorch layout (out_features, in_features); biases as
# (out_features, 1) column vectors for the lane-dense kernel.
# ----------------------------------------------------------------------------
def init_pinn_params(layers, key):
    weights, biases = [], []
    for i in range(len(layers) - 1):
        key, sub = jax.random.split(key)
        fan_in, fan_out = layers[i], layers[i + 1]
        std = (2.0 / (fan_in + fan_out)) ** 0.5  # xavier normal, gain=1.0
        w_pt = std * jax.random.normal(sub, (fan_out, fan_in), jnp.float32)
        weights.append(w_pt)  # (out, in) -- PyTorch layout
        biases.append(jnp.zeros((fan_out, 1), jnp.float32))
    # Scalar parameters from __init__ (unused in forward(), kept for fidelity).
    n_param = jnp.zeros((1,), jnp.float32)
    bed_slope_coef = jnp.zeros((1,), jnp.float32)
    return weights, biases, n_param, bed_slope_coef


def pinn_forward_reference(x, weights, biases):
    h = x
    n_layers = len(weights)
    for li in range(n_layers):
        h = h @ weights[li].T + biases[li].T
        if li < n_layers - 1:
            h = jnp.tanh(h)
    return h


if __name__ == "__main__":
    key = jax.random.PRNGKey(0)
    layers = [2, 32, 32, 1]  # typical PINN: inputs (x, t) -> hidden -> scalar

    kp, kx = jax.random.split(key)
    weights, biases, n_param, bed_slope_coef = init_pinn_params(layers, kp)

    # Small batch: single whole-batch tile path.
    batch = 16
    x = jax.random.normal(kx, (batch, layers[0]), jnp.float32)
    out = jax.block_until_ready(pinn_forward(x, weights, biases))
    ref = pinn_forward_reference(x, weights, biases)
    assert out.shape == (batch, layers[-1])
    assert jnp.allclose(out, ref, atol=1e-5, rtol=1e-5), "mismatch (small batch)"

    # Larger, non-aligned batch: exercises the tiled + zero-padded path
    # (128-lane tiles, multi-step parallel grid).
    batch2 = 300
    x2 = jax.random.normal(jax.random.PRNGKey(1), (batch2, layers[0]), jnp.float32)
    out2 = jax.block_until_ready(pinn_forward(x2, weights, biases))
    ref2 = pinn_forward_reference(x2, weights, biases)
    assert out2.shape == (batch2, layers[-1])
    assert jnp.allclose(out2, ref2, atol=1e-5, rtol=1e-5), "mismatch (tiled batch)"

    print("KERNEL_OK")
</pallas_src>

<mosaic_0001>
module attributes {stable_mosaic.version = 11 : i64} {
  func.func @_mlp_kernel(%arg0: i32, %arg1: memref<16x2xf32, #tpu.memory_space<vmem>>, %arg2: memref<32x2xf32, #tpu.memory_space<vmem>>, %arg3: memref<32x32xf32, #tpu.memory_space<vmem>>, %arg4: memref<32x1xf32, #tpu.memory_space<vmem>>, %arg5: memref<32x1xf32, #tpu.memory_space<vmem>>, %arg6: memref<32x1xf32, #tpu.memory_space<vmem>>, %arg7: memref<1x1xf32, #tpu.memory_space<vmem>>, %arg8: memref<1x16xf32, #tpu.memory_space<vmem>>) attributes {dimension_semantics = [#tpu.dimension_semantics<parallel>], iteration_bounds = array<i64: 1>, scalar_prefetch = 0 : i64, scratch_operands = 0 : i64, tpu.core_type = #tpu.core_type<tc>, window_params = [{transform_indices = @transform_0, window_bounds = array<i64: 16, 2>}, {pipeline_mode = #tpu.pipeline_mode<synchronous>, transform_indices = @transform_1, window_bounds = array<i64: 32, 2>}, {pipeline_mode = #tpu.pipeline_mode<synchronous>, transform_indices = @transform_2, window_bounds = array<i64: 32, 32>}, {pipeline_mode = #tpu.pipeline_mode<synchronous>, transform_indices = @transform_3, window_bounds = array<i64: 32, 1>}, {pipeline_mode = #tpu.pipeline_mode<synchronous>, transform_indices = @transform_4, window_bounds = array<i64: 32, 1>}, {pipeline_mode = #tpu.pipeline_mode<synchronous>, transform_indices = @transform_5, window_bounds = array<i64: 32, 1>}, {pipeline_mode = #tpu.pipeline_mode<synchronous>, transform_indices = @transform_6, window_bounds = array<i64: 1, 1>}, {transform_indices = @transform_7, window_bounds = array<i64: 1, 16>}]} {
    %c0 = arith.constant 0 : index
    %c0_0 = arith.constant 0 : index
    %0 = vector.load %arg2[%c0, %c0_0] : memref<32x2xf32, #tpu.memory_space<vmem>>, vector<32x2xf32>
    %c0_1 = arith.constant 0 : index
    %c0_2 = arith.constant 0 : index
    %1 = vector.load %arg1[%c0_1, %c0_2] : memref<16x2xf32, #tpu.memory_space<vmem>>, vector<16x2xf32>
    %cst = arith.constant dense<0.000000e+00> : vector<32x16xf32>
    %2 = tpu.matmul %0, %1, %cst {dimension_numbers = #tpu.dot_dimension_numbers<[1], [1], [0], [0], [0, 0, 1, 0], [], []>} : vector<32x2xf32>, vector<16x2xf32>, vector<32x16xf32> -> vector<32x16xf32>
    %c0_3 = arith.constant 0 : index
    %c0_4 = arith.constant 0 : index
    %3 = vector.load %arg5[%c0_3, %c0_4] : memref<32x1xf32, #tpu.memory_space<vmem>>, vector<32x1xf32>
    %4 = vector.broadcast %3 : vector<32x1xf32> to vector<32x16xf32>
    %5 = arith.addf %2, %4 : vector<32x16xf32>
    %6 = math.tanh %5 : vector<32x16xf32>
    %c0_5 = arith.constant 0 : index
    %c0_6 = arith.constant 0 : index
    %7 = vector.load %arg6[%c0_5, %c0_6] : memref<32x1xf32, #tpu.memory_space<vmem>>, vector<32x1xf32>
    %c0_7 = arith.constant 0 : index
    %c0_8 = arith.constant 0 : index
    %8 = vector.load %arg3[%c0_7, %c0_8] : memref<32x32xf32, #tpu.memory_space<vmem>>, vector<32x32xf32>
    %cst_9 = arith.constant dense<0.000000e+00> : vector<32x16xf32>
    %9 = tpu.matmul %8, %6, %cst_9 {dimension_numbers = #tpu.dot_dimension_numbers<[1], [0], [0], [1], [0, 0, 1, 1], [], []>} : vector<32x32xf32>, vector<32x16xf32>, vector<32x16xf32> -> vector<32x16xf32>
    %10 = vector.broadcast %7 : vector<32x1xf32> to vector<32x16xf32>
    %11 = arith.addf %9, %10 : vector<32x16xf32>
    %12 = math.tanh %11 : vector<32x16xf32>
    %c0_10 = arith.constant 0 : index
    %c0_11 = arith.constant 0 : index
    %13 = vector.load %arg7[%c0_10, %c0_11] : memref<1x1xf32, #tpu.memory_space<vmem>>, vector<1x1xf32>
    %c0_12 = arith.constant 0 : index
    %c0_13 = arith.constant 0 : index
    %14 = vector.load %arg4[%c0_12, %c0_13] : memref<32x1xf32, #tpu.memory_space<vmem>>, vector<32x1xf32>
    %15 = vector.broadcast %14 : vector<32x1xf32> to vector<32x16xf32>
    %16 = arith.mulf %15, %12 : vector<32x16xf32>
    %cst_14 = arith.constant dense<0.000000e+00> : vector<16xf32>
    %17 = vector.multi_reduction <add>, %16, %cst_14 [0] : vector<32x16xf32> to vector<16xf32>
    %18 = vector.shape_cast %17 : vector<16xf32> to vector<1x16xf32>
    %19 = vector.broadcast %13 : vector<1x1xf32> to vector<1x16xf32>
    %20 = arith.addf %18, %19 : vector<1x16xf32>
    %c0_15 = arith.constant 0 : index
    %c0_16 = arith.constant 0 : index
    %21 = vector.load %arg8[%c0_15, %c0_16] : memref<1x16xf32, #tpu.memory_space<vmem>>, vector<1x16xf32>
    tpu.vector_store %arg8[%c0_15, %c0_16], %20 {strides = array<i32>} : memref<1x16xf32, #tpu.memory_space<vmem>>, vector<1x16xf32>,
    return
  }
  func.func @transform_0(%arg0: i32) -> (i32, i32) {
    %c0_i32 = arith.constant 0 : i32
    %c0_i32_0 = arith.constant 0 : i32
    return %arg0, %c0_i32 : i32, i32
  }
  func.func @transform_1(%arg0: i32) -> (i32, i32) {
    %c0_i32 = arith.constant 0 : i32
    %c0_i32_0 = arith.constant 0 : i32
    %c0_i32_1 = arith.constant 0 : i32
    return %c0_i32, %c0_i32_0 : i32, i32
  }
  func.func @transform_2(%arg0: i32) -> (i32, i32) {
    %c0_i32 = arith.constant 0 : i32
    %c0_i32_0 = arith.constant 0 : i32
    %c0_i32_1 = arith.constant 0 : i32
    return %c0_i32, %c0_i32_0 : i32, i32
  }
  func.func @transform_3(%arg0: i32) -> (i32, i32) {
    %c0_i32 = arith.constant 0 : i32
    %c0_i32_0 = arith.constant 0 : i32
    %c0_i32_1 = arith.constant 0 : i32
    return %c0_i32, %c0_i32_0 : i32, i32
  }
  func.func @transform_4(%arg0: i32) -> (i32, i32) {
    %c0_i32 = arith.constant 0 : i32
    %c0_i32_0 = arith.constant 0 : i32
    %c0_i32_1 = arith.constant 0 : i32
    return %c0_i32, %c0_i32_0 : i32, i32
  }
  func.func @transform_5(%arg0: i32) -> (i32, i32) {
    %c0_i32 = arith.constant 0 : i32
    %c0_i32_0 = arith.constant 0 : i32
    %c0_i32_1 = arith.constant 0 : i32
    return %c0_i32, %c0_i32_0 : i32, i32
  }
  func.func @transform_6(%arg0: i32) -> (i32, i32) {
    %c0_i32 = arith.constant 0 : i32
    %c0_i32_0 = arith.constant 0 : i32
    %c0_i32_1 = arith.constant 0 : i32
    return %c0_i32, %c0_i32_0 : i32, i32
  }
  func.func @transform_7(%arg0: i32) -> (i32, i32) {
    %c0_i32 = arith.constant 0 : i32
    %c0_i32_0 = arith.constant 0 : i32
    return %c0_i32, %arg0 : i32, i32
  }
}

</mosaic_0001>

<llo_original>
// kernel: tpu_custom_call.1
$region0: #{tpu_custom_call.1}
  #allocation0 [shape = 'u32[]', space=smem, size = 0x4, offset = 0x4, fixed_abs, tag = 'smem constant byte address 0x4 - core index']
  #allocation1 [shape = 'u32[144,128]{1,0:T(1,128)}', space=vmem, size = 0x12000, scoped, tag = 'internal scratch']
  #allocation2 [shape = 'f32[1,1]{1,0:T(1,128)S(1)}', space=vmem, size = 0x200, scoped, tag = 'scoped memory for tpu_custom_call.1']
  %s0 = inlined_call_operand.vmem [shape: f32[16,2], index: 0, kind: input, shape index: {}]
  %s1 = inlined_call_operand.vmem [shape: f32[32,2], index: 1, kind: input, shape index: {}]
  %s2 = inlined_call_operand.vmem [shape: f32[32,32], index: 2, kind: input, shape index: {}]
  %s3 = inlined_call_operand.vmem [shape: f32[32,1], index: 3, kind: input, shape index: {}]
  %s4 = inlined_call_operand.vmem [shape: f32[32,1], index: 4, kind: input, shape index: {}]
  %s5 = inlined_call_operand.vmem [shape: f32[32,1], index: 5, kind: input, shape index: {}]
  %s6 = inlined_call_operand.<no memory space> [shape: f32[1,1], index: 6, kind: input, shape index: {}]
  %s7 = inlined_call_operand.hbm [shape: f32[1,16], index: 7, kind: output, shape index: {}]
  %s8 = sld [smem:[#allocation0]]
  $region38: #{tpu_custom_call.1} parent=0
    _
  %s10 = ssub.s32 1, %s8
  %s11 = scalar_select 0, %s10, %s8
  %v12 = vstv %s6
  %13 = vst [vmem:[#allocation2] sm:$0x1] %v12
  $region1: #{tpu_custom_call.1} parent=0
    #allocation3 [shape = 'u8[512]{0}', space=vmem, size = 0x400, scoped, tag = 'output window, operand 0, single buffered']
    #allocation4 [shape = 's32[1]{0}', space=sflag, size = 0x4, scoped, tag = 'scoped memory for tpu_custom_call.1']
    %14 = vsyncpa [#allocation4], 0
    // Predicated region
    $region2: #{tpu_custom_call.1} parent=1 // pred_check
      _
    $region3: #{tpu_custom_call.1} parent=1 // pred_check_branch
      %16 = sbr.rel (0) target = $region5
    $region4: #{tpu_custom_call.1} parent=1 // pred_region
      _
    $region5: #{tpu_custom_call.1} parent=1 // pred_fallthru
      _
    // Predicated region
    $region6: #{tpu_custom_call.1} parent=1 // pred_check
      _
    $region7: #{tpu_custom_call.1} parent=1 // pred_check_branch
      %18 = sbr.rel (0) target = $region9
    $region8: #{tpu_custom_call.1} parent=1 // pred_region
      _
    $region9: #{tpu_custom_call.1} parent=1 // pred_fallthru
      _
    // Predicated region
    $region10: #{tpu_custom_call.1} parent=1 // pred_check
      _
    $region11: #{tpu_custom_call.1} parent=1 // pred_check_branch
      %20 = sbr.rel (0) target = $region13
    $region12: #{tpu_custom_call.1} parent=1 // pred_region
      _
    $region13: #{tpu_custom_call.1} parent=1 // pred_fallthru
      _
    // Predicated region
    $region14: #{tpu_custom_call.1} parent=1 // pred_check
      _
    $region15: #{tpu_custom_call.1} parent=1 // pred_check_branch
      %22 = sbr.rel (0) target = $region17
    $region16: #{tpu_custom_call.1} parent=1 // pred_region
      _
    $region17: #{tpu_custom_call.1} parent=1 // pred_fallthru
      _
    // Predicated region
    $region18: #{tpu_custom_call.1} parent=1 // pred_check
      _
    $region19: #{tpu_custom_call.1} parent=1 // pred_check_branch
      %24 = sbr.rel (0) target = $region21
    $region20: #{tpu_custom_call.1} parent=1 // pred_region
      _
    $region21: #{tpu_custom_call.1} parent=1 // pred_fallthru
      _
    // Predicated region
    $region22: #{tpu_custom_call.1} parent=1 // pred_check
      _
    $region23: #{tpu_custom_call.1} parent=1 // pred_check_branch
      %26 = sbr.rel (0) target = $region25
    $region24: #{tpu_custom_call.1} parent=1 // pred_region
      _
    $region25: #{tpu_custom_call.1} parent=1 // pred_fallthru
      _
    // Predicated region
    $region26: #{tpu_custom_call.1} parent=1 // pred_check
      _
    $region27: #{tpu_custom_call.1} parent=1 // pred_check_branch
      %28 = sbr.rel (0) target = $region29
    $region28: #{tpu_custom_call.1} parent=1 // pred_region
      _
    $region29: #{tpu_custom_call.1} parent=1 // pred_fallthru
      _
    %v29 = vld [vmem:[%s1] sm:$0xff]
    %v30 = vld [vmem:[%s1 + $0x8] sm:$0xff]
    %v31 = vld [vmem:[%s1 + $0x10] sm:$0xff]
    %v32 = vld [vmem:[%s1 + $0x18] sm:$0xff]
    %v33 = vld [vmem:[%s0] sm:$0xff]
    %v34 = vld [vmem:[%s0 + $0x8] sm:$0xff]
    %v35 = vld [vmem:[%s4] sm:$0xff]
    %v36 = vld [vmem:[%s4 + $0x8] sm:$0xff]
    %v37 = vld [vmem:[%s4 + $0x10] sm:$0xff]
    %v38 = vld [vmem:[%s4 + $0x18] sm:$0xff]
    %40 = vset.pattern.permute.xlu0 0
    %41 = vperm.xlu0 %40, %v35
    %v42 = vpop.permute.xlu0 %41
    %45 = vset.pattern.permute.xlu0 0
    %46 = vperm.xlu0 %45, %v36
    %v47 = vpop.permute.xlu0 %46
    %50 = vset.pattern.permute.xlu0 0
    %51 = vperm.xlu0 %50, %v37
    %v52 = vpop.permute.xlu0 %51
    %55 = vset.pattern.permute.xlu0 0
    %56 = vperm.xlu0 %55, %v38
    %v57 = vpop.permute.xlu0 %56
    %vm59 = vcmask 15360
    %v61 = vsel %vm59, %v29, 0
    %v64 = vsel %vm59, %v30, 0
    %v67 = vsel %vm59, %v31, 0
    %v70 = vsel %vm59, %v32, 0
    %v73 = vsel %vm59, %v33, 0
    %v76 = vsel %vm59, %v34, 0
    %78 = vmatprep.subr.mxu0 0.0
    %79 = vmatpush1.xpose.msra.mxu0 0.0
    %80 = vmatprep.subr.mxu0 0.0
    %81 = vmatpush1.xpose.msra.mxu0 0.0
    %82 = vmatprep.subr.mxu0 0.0
    %83 = vmatpush1.xpose.msra.mxu0 0.0
    %84 = vmatprep.subr.mxu0 0.0
    %85 = vmatpush1.xpose.msra.mxu0 0.0
    %86 = vmatprep.subr.mxu0 0.0
    %87 = vmatpush1.xpose.msra.mxu0 0.0
    %88 = vmatprep.subr.mxu0 0.0
    %89 = vmatpush1.xpose.msra.mxu0 0.0
    %90 = vmatprep.subr.mxu0 0.0
    %91 = vmatpush1.xpose.msra.mxu0 0.0
    %92 = vmatprep.subr.mxu0 0.0
    %93 = vmatpush1.xpose.msra.mxu0 0.0
    %94 = vmatprep.subr.mxu0 0.0
    %95 = vmatpush1.xpose.msra.mxu0 0.0
    %96 = vmatprep.subr.mxu0 0.0
    %97 = vmatpush1.xpose.msra.mxu0 0.0
    %98 = vmatprep.subr.mxu0 0.0
    %99 = vmatpush1.xpose.msra.mxu0 0.0
    %100 = vmatprep.subr.mxu0 0.0
    %101 = vmatpush1.xpose.msra.mxu0 0.0
    %102 = vmatprep.subr.mxu0 0.0
    %103 = vmatpush1.xpose.msra.mxu0 0.0
    %104 = vmatprep.subr.mxu0 0.0
    %105 = vmatpush1.xpose.msra.mxu0 0.0
    %106 = vmatprep.subr.mxu0 0.0
    %107 = vmatpush1.xpose.msra.mxu0 %v76
    %108 = vmatprep.subr.mxu0 0.0
    %109 = vmatpush1.xpose.msra.mxu0 %v73
    %110 = vmatprep.subr.mxu0 0.0
    %111 = vmatpush2.xpose.msra.mxu0 0.0
    %112 = vmatprep.subr.mxu0 0.0
    %113 = vmatpush2.xpose.msra.mxu0 0.0
    %114 = vmatprep.subr.mxu0 0.0
    %115 = vmatpush2.xpose.msra.mxu0 0.0
    %116 = vmatprep.subr.mxu0 0.0
    %117 = vmatpush2.xpose.msra.mxu0 0.0
    %118 = vmatprep.subr.mxu0 0.0
    %119 = vmatpush2.xpose.msra.mxu0 0.0
    %120 = vmatprep.subr.mxu0 0.0
    %121 = vmatpush2.xpose.msra.mxu0 0.0
    %122 = vmatprep.subr.mxu0 0.0
    %123 = vmatpush2.xpose.msra.mxu0 0.0
    %124 = vmatprep.subr.mxu0 0.0
    %125 = vmatpush2.xpose.msra.mxu0 0.0
    %126 = vmatprep.subr.mxu0 0.0
    %127 = vmatpush2.xpose.msra.mxu0 0.0
    %128 = vmatprep.subr.mxu0 0.0
    %129 = vmatpush2.xpose.msra.mxu0 0.0
    %130 = vmatprep.subr.mxu0 0.0
    %131 = vmatpush2.xpose.msra.mxu0 0.0
    %132 = vmatprep.subr.mxu0 0.0
    %133 = vmatpush2.xpose.msra.mxu0 0.0
    %134 = vmatprep.subr.mxu0 0.0
    %135 = vmatpush2.xpose.msra.mxu0 0.0
    %136 = vmatprep.subr.mxu0 0.0
    %137 = vmatpush2.xpose.msra.mxu0 0.0
    %138 = vmatprep.subr.mxu0 0.0
    %139 = vmatpush2.xpose.msra.mxu0 0.0
    %140 = vmatprep.subr.mxu0 0.0
    %141 = vmatpush2.xpose.msra.mxu0 0.0
    %142 = vmatprep.mubr.f32.mxu0 0.0
    %143 = vmatmul.mubr.f32.gmra.mxu0 %v61
    %v144 = vpop.f32.mrf.mxu0
    %v145 = vadd.f32 %v42, %v144
    %v146 = vpop.f32.mrf.mxu0
    %147 = vmatprep.mubr.f32.mxu0 0.0
    %148 = vmatmul.mubr.f32.gmra.mxu0 %v64
    %v149 = vpop.f32.mrf.mxu0
    %v150 = vadd.f32 %v47, %v149
    %v151 = vpop.f32.mrf.mxu0
    %152 = vmatprep.mubr.f32.mxu0 0.0
    %153 = vmatmul.mubr.f32.gmra.mxu0 %v67
    %v154 = vpop.f32.mrf.mxu0
    %v155 = vadd.f32 %v52, %v154
    %v156 = vpop.f32.mrf.mxu0
    %157 = vmatprep.mubr.f32.mxu0 0.0
    %158 = vmatmul.mubr.f32.gmra.mxu0 %v70
    %v159 = vpop.f32.mrf.mxu0
    %v160 = vadd.f32 %v57, %v159
    %v161 = vpop.f32.mrf.mxu0
    %162 = vdwg.mxu0
    %v163 = vtanh.pop %v145
    %v164 = vtanh.pop %v150
    %v165 = vtanh.pop %v155
    %v166 = vtanh.pop %v160
    %v167 = vld [vmem:[%s5] sm:$0xff]
    %v168 = vld [vmem:[%s5 + $0x8] sm:$0xff]
    %v169 = vld [vmem:[%s5 + $0x10] sm:$0xff]
    %v170 = vld [vmem:[%s5 + $0x18] sm:$0xff]
    %v171 = vld [vmem:[%s2] sm:$0xff]
    %v172 = vld [vmem:[%s2 + $0x8] sm:$0xff]
    %v173 = vld [vmem:[%s2 + $0x10] sm:$0xff]
    %v174 = vld [vmem:[%s2 + $0x18] sm:$0xff]
    %176 = vset.pattern.permute.xlu0 0
    %177 = vperm.xlu0 %176, %v167
    %v178 = vpop.permute.xlu0 %177
    %181 = vset.pattern.permute.xlu0 0
    %182 = vperm.xlu0 %181, %v168
    %v183 = vpop.permute.xlu0 %182
    %186 = vset.pattern.permute.xlu0 0
    %187 = vperm.xlu0 %186, %v169
    %v188 = vpop.permute.xlu0 %187
    %191 = vset.pattern.permute.xlu0 0
    %192 = vperm.xlu0 %191, %v170
    %v193 = vpop.permute.xlu0 %192
    %vm195 = vcmask 261120
    %v197 = vsel %vm195, %v171, 0
    %v200 = vsel %vm195, %v172, 0
    %v203 = vsel %vm195, %v173, 0
    %v206 = vsel %vm195, %v174, 0
    %208 = vmatprep.subr.mxu0 0.0
    %209 = vmatpush1.msra.mxu0 0.0
    %210 = vmatprep.subr.mxu0 0.0
    %211 = vmatpush1.msra.mxu0 0.0
    %212 = vmatprep.subr.mxu0 0.0
    %213 = vmatpush1.msra.mxu0 0.0
    %214 = vmatprep.subr.mxu0 0.0
    %215 = vmatpush1.msra.mxu0 0.0
    %216 = vmatprep.subr.mxu0 0.0
    %217 = vmatpush1.msra.mxu0 0.0
    %218 = vmatprep.subr.mxu0 0.0
    %219 = vmatpush1.msra.mxu0 0.0
    %220 = vmatprep.subr.mxu0 0.0
    %221 = vmatpush1.msra.mxu0 0.0
    %222 = vmatprep.subr.mxu0 0.0
    %223 = vmatpush1.msra.mxu0 0.0
    %224 = vmatprep.subr.mxu0 0.0
    %225 = vmatpush1.msra.mxu0 0.0
    %226 = vmatprep.subr.mxu0 0.0
    %227 = vmatpush1.msra.mxu0 0.0
    %228 = vmatprep.subr.mxu0 0.0
    %229 = vmatpush1.msra.mxu0 0.0
    %230 = vmatprep.subr.mxu0 0.0
    %231 = vmatpush1.msra.mxu0 0.0
    %232 = vmatprep.subr.mxu0 0.0
    %233 = vmatpush1.msra.mxu0 %v166
    %234 = vmatprep.subr.mxu0 0.0
    %235 = vmatpush1.msra.mxu0 %v165
    %236 = vmatprep.subr.mxu0 0.0
    %237 = vmatpush1.msra.mxu0 %v164
    %238 = vmatprep.subr.mxu0 0.0
    %239 = vmatpush1.msra.mxu0 %v163
    %240 = vmatprep.subr.mxu0 0.0
    %241 = vmatpush2.msra.mxu0 0.0
    %242 = vmatprep.subr.mxu0 0.0
    %243 = vmatpush2.msra.mxu0 0.0
    %244 = vmatprep.subr.mxu0 0.0
    %245 = vmatpush2.msra.mxu0 0.0
    %246 = vmatprep.subr.mxu0 0.0
    %247 = vmatpush2.msra.mxu0 0.0
    %248 = vmatprep.subr.mxu0 0.0
    %249 = vmatpush2.msra.mxu0 0.0
    %250 = vmatprep.subr.mxu0 0.0
    %251 = vmatpush2.msra.mxu0 0.0
    %252 = vmatprep.subr.mxu0 0.0
    %253 = vmatpush2.msra.mxu0 0.0
    %254 = vmatprep.subr.mxu0 0.0
    %255 = vmatpush2.msra.mxu0 0.0
    %256 = vmatprep.subr.mxu0 0.0
    %257 = vmatpush2.msra.mxu0 0.0
    %258 = vmatprep.subr.mxu0 0.0
    %259 = vmatpush2.msra.mxu0 0.0
    %260 = vmatprep.subr.mxu0 0.0
    %261 = vmatpush2.msra.mxu0 0.0
    %262 = vmatprep.subr.mxu0 0.0
    %263 = vmatpush2.msra.mxu0 0.0
    %264 = vmatprep.subr.mxu0 0.0
    %265 = vmatpush2.msra.mxu0 0.0
    %266 = vmatprep.subr.mxu0 0.0
    %267 = vmatpush2.msra.mxu0 0.0
    %268 = vmatprep.subr.mxu0 0.0
    %269 = vmatpush2.msra.mxu0 0.0
    %270 = vmatprep.subr.mxu0 0.0
    %271 = vmatpush2.msra.mxu0 0.0
    %272 = vmatprep.mubr.f32.mxu0 0.0
    %273 = vmatmul.mubr.f32.gmra.mxu0 %v197
    %v274 = vpop.f32.mrf.mxu0
    %v275 = vadd.f32 %v178, %v274
    %v276 = vpop.f32.mrf.mxu0
    %277 = vmatprep.mubr.f32.mxu0 0.0
    %278 = vmatmul.mubr.f32.gmra.mxu0 %v200
    %v279 = vpop.f32.mrf.mxu0
    %v280 = vadd.f32 %v183, %v279
    %v281 = vpop.f32.mrf.mxu0
    %282 = vmatprep.mubr.f32.mxu0 0.0
    %283 = vmatmul.mubr.f32.gmra.mxu0 %v203
    %v284 = vpop.f32.mrf.mxu0
    %v285 = vadd.f32 %v188, %v284
    %v286 = vpop.f32.mrf.mxu0
    %287 = vmatprep.mubr.f32.mxu0 0.0
    %288 = vmatmul.mubr.f32.gmra.mxu0 %v206
    %v289 = vpop.f32.mrf.mxu0
    %v290 = vadd.f32 %v193, %v289
    %v291 = vpop.f32.mrf.mxu0
    %292 = vdwg.mxu0
    %v293 = vtanh.pop %v275
    %v294 = vtanh.pop %v280
    %v295 = vtanh.pop %v285
    %v296 = vtanh.pop %v290
    %v297 = vld [vmem:[#allocation2] sm:$0x1]
    %v298 = vld [vmem:[%s3] sm:$0xff]
    %v299 = vld [vmem:[%s3 + $0x8] sm:$0xff]
    %v300 = vld [vmem:[%s3 + $0x10] sm:$0xff]
    %v301 = vld [vmem:[%s3 + $0x18] sm:$0xff]
    %303 = vset.pattern.permute.xlu0 0
    %304 = vperm.xlu0 %303, %v298
    %v305 = vpop.permute.xlu0 %304
    %308 = vset.pattern.permute.xlu0 0
    %309 = vperm.xlu0 %308, %v299
    %v310 = vpop.permute.xlu0 %309
    %313 = vset.pattern.permute.xlu0 0
    %314 = vperm.xlu0 %313, %v300
    %v315 = vpop.permute.xlu0 %314
    %318 = vset.pattern.permute.xlu0 0
    %319 = vperm.xlu0 %318, %v301
    %v320 = vpop.permute.xlu0 %319
    %v322 = vmul.f32 %v305, %v293
    %v323 = vmul.f32 %v310, %v294
    %v324 = vmul.f32 %v315, %v295
    %v325 = vmul.f32 %v320, %v296
    %vm326 = vcmask 130048
    %v327 = vsel %vm326, %v322, 0.0
    %v328 = vsel %vm326, %v323, 0.0
    %v329 = vadd.f32 %v327, %v328
    %v330 = vsel %vm326, %v324, 0.0
    %v331 = vadd.f32 %v329, %v330
    %v332 = vsel %vm326, %v325, 0.0
    %v333 = vadd.f32 %v331, %v332
    %v334 = vrot.slane %v333, 4
    %v335 = vadd.f32 %v333, %v334
    %v336 = vrot.slane %v335, 2
    %v337 = vadd.f32 %v335, %v336
    %v338 = vrot.slane %v337, 1
    %v339 = vadd.f32 %v337, %v338
    %341 = vset.pattern.permute.xlu0 0
    %342 = vperm.xlu0 %341, %v297
    %v343 = vpop.permute.xlu0 %342
    %v345 = vlaneseq
    %v346 = vshrl.u32 %v345, 7
    %v347 = vsub.s32 0, %v346
    %v348 = vrot.slane %v343, %v347
    %v349 = vadd.f32 %v339, %v348
    %vm350 = vcmask 122880
    %351 = vst.msk [vmem:[#allocation3] sm:$0x1] %vm350, %v349
    // Predicated region
    $region30: #{tpu_custom_call.1} parent=1 // pred_check
      _
    $region31: #{tpu_custom_call.1} parent=1 // pred_check_branch
      %353 = sbr.rel (0) target = $region33
    $region32: #{tpu_custom_call.1} parent=1 // pred_region
      %s355 = ssub.s32 16, 16
      %356 = vsyncadd [#allocation4], %s355
      %s358 = sshll.u32 [#allocation3], 4
      %s359 = int_to_ptr.vmem [resolvable:$true] %s358
      %361 = dma.vmem_to_hbm [thread:$0]  %s359, 16, %s7, [#allocation4]
    $region33: #{tpu_custom_call.1} parent=1 // pred_fallthru
      _
    // Predicated region
    $region34: #{tpu_custom_call.1} parent=1 // pred_check
      _
    $region35: #{tpu_custom_call.1} parent=1 // pred_check_branch
      %363 = sbr.rel (0) target = $region37
    $region36: #{tpu_custom_call.1} parent=1 // pred_region
      %364 = dma.done [#allocation4], 16
    $region37: #{tpu_custom_call.1} parent=1 // pred_fallthru
      _
    %365 = vsyncpa [#allocation4], 1

</llo_original>
